<compile_context>
chip_gen: v6e
topology: v6e:2x2x1
jax: 0.10.0
libtpu: 0.0.40
codegen_flags: <defaults>
</compile_context>

<pallas_src>
import math

import jax
import jax.numpy as jnp
from jax.experimental import pallas as pl
from jax.experimental.pallas import tpu as pltpu

IN_FEATURES = 784
IN_PAD = 896          # round_up(784, 128) -> lane-dense first matmul
OUT_FEATURES = 10
OUT_PAD = 128         # lane-dense logits (sliced back to 10 in the wrapper)


def _round_up(x, m):
    return ((x + m - 1) // m) * m


def _mlp_kernel(x_ref, w1_ref, w2_ref, w3_ref, w4_ref, w5_ref,
                l1_ref, l2_ref, l3_ref, l4_ref, out_ref):
    """One batch tile: 4x (matmul + ReLU) + final matmul.

    Matmul inputs are bf16 (or whatever compute dtype the wrapper chose),
    accumulation and ReLU are f32, feature outputs are stored immediately
    after each layer to keep vreg live ranges short.
    """
    cdt = w1_ref.dtype

    x = x_ref[...]
    h1 = jnp.maximum(
        jnp.dot(x, w1_ref[...], preferred_element_type=jnp.float32), 0.0)
    l1_ref[...] = h1.astype(l1_ref.dtype)

    h2 = jnp.maximum(
        jnp.dot(h1.astype(cdt), w2_ref[...],
                preferred_element_type=jnp.float32), 0.0)
    l2_ref[...] = h2.astype(l2_ref.dtype)

    h3 = jnp.maximum(
        jnp.dot(h2.astype(cdt), w3_ref[...],
                preferred_element_type=jnp.float32), 0.0)
    l3_ref[...] = h3.astype(l3_ref.dtype)

    h4 = jnp.maximum(
        jnp.dot(h3.astype(cdt), w4_ref[...],
                preferred_element_type=jnp.float32), 0.0)
    l4_ref[...] = h4.astype(l4_ref.dtype)

    out = jnp.dot(h4.astype(cdt), w5_ref[...],
                  preferred_element_type=jnp.float32)
    out_ref[...] = out.astype(out_ref.dtype)


def prepare_params(params, *, compute_dtype=jnp.bfloat16):
    """One-time transpose + zero-pad + cast of the PyTorch-layout weights.

    PyTorch Linear weight is (out, in); we store (in, out) so the kernel hot
    path is plain x @ W. Padding columns/rows are zero, so padded lanes carry
    exact zeros through every layer and the sliced result is unchanged.
    """
    H = params["fc1"].shape[0]
    Hp = max(_round_up(H, 128), 128)

    def tp(w):  # transpose + cast
        return w.T.astype(compute_dtype)

    w1 = jnp.pad(tp(params["fc1"]), ((0, IN_PAD - IN_FEATURES), (0, Hp - H)))
    w2 = jnp.pad(tp(params["fc2"]), ((0, Hp - H), (0, Hp - H)))
    w3 = jnp.pad(tp(params["fc3"]), ((0, Hp - H), (0, Hp - H)))
    w4 = jnp.pad(tp(params["fc4"]), ((0, Hp - H), (0, Hp - H)))
    w5 = jnp.pad(tp(params["fc5"]), ((0, Hp - H), (0, OUT_PAD - OUT_FEATURES)))

    return {"H": H, "Hp": Hp, "compute_dtype": compute_dtype,
            "w1": w1, "w2": w2, "w3": w3, "w4": w4, "w5": w5}


def fcmulti_feature_forward(x_nchw, prepared, *, block_rows=256):
    """Returns (output, features) mirroring FCmulti_feature.forward.

    features = [layer0(flattened input), layer1..layer4 (post-ReLU), output].
    """
    B = x_nchw.shape[0]
    x_flat = x_nchw.reshape(B, -1)  # == x.view(B, -1), f32, feature[0]
    assert x_flat.shape[1] == IN_FEATURES

    H, Hp = prepared["H"], prepared["Hp"]
    cdt = prepared["compute_dtype"]

    # Batch tile: multiple of 16 (bf16 sublane packing), capped at block_rows.
    TB = min(_round_up(block_rows, 16), _round_up(max(B, 1), 16))
    Bp = _round_up(B, TB)
    grid = (Bp // TB,)

    # Pad batch + input-feature dims; cast matmul input to compute dtype.
    x_p = jnp.pad(x_flat.astype(cdt),
                  ((0, Bp - B), (0, IN_PAD - IN_FEATURES)))

    w1, w2, w3, w4, w5 = (prepared[k] for k in ("w1", "w2", "w3", "w4", "w5"))

    act_spec = lambda cols: pl.BlockSpec((TB, cols), lambda i: (i, 0))
    w_spec = lambda shape: pl.BlockSpec(shape, lambda i: (0, 0))

    out_shapes = (
        jax.ShapeDtypeStruct((Bp, Hp), jnp.float32),       # layer1_output
        jax.ShapeDtypeStruct((Bp, Hp), jnp.float32),       # layer2_output
        jax.ShapeDtypeStruct((Bp, Hp), jnp.float32),       # layer3_output
        jax.ShapeDtypeStruct((Bp, Hp), jnp.float32),       # layer4_output
        jax.ShapeDtypeStruct((Bp, OUT_PAD), jnp.float32),  # output (padded)
    )

    # Explicit VMEM budget: double-buffered input/output blocks + margin.
    itemsize = jnp.dtype(cdt).itemsize
    in_bytes = (TB * IN_PAD + IN_PAD * Hp + 3 * Hp * Hp + Hp * OUT_PAD) * itemsize
    out_bytes = (4 * TB * Hp + TB * OUT_PAD) * 4
    vmem_limit = min(max(2 * (in_bytes + out_bytes) + (4 << 20), 16 << 20),
                     64 << 20)
    # TODO(synk): for very large H (weights alone > ~48 MiB) switch to
    # per-layer K/N streaming (pltpu.emit_pipeline) instead of weight-resident.

    l1, l2, l3, l4, out_p = pl.pallas_call(
        _mlp_kernel,
        out_shape=out_shapes,
        grid=grid,
        in_specs=[
            act_spec(IN_PAD),
            w_spec((IN_PAD, Hp)),
            w_spec((Hp, Hp)),
            w_spec((Hp, Hp)),
            w_spec((Hp, Hp)),
            w_spec((Hp, OUT_PAD)),
        ],
        out_specs=(
            act_spec(Hp), act_spec(Hp), act_spec(Hp), act_spec(Hp),
            act_spec(OUT_PAD),
        ),
        compiler_params=pltpu.CompilerParams(
            dimension_semantics=("parallel",),
            vmem_limit_bytes=int(vmem_limit)),
    )(x_p, w1, w2, w3, w4, w5)

    out = out_p[:B, :OUT_FEATURES]
    features = [
        x_flat,            # feature[0]
        l1[:B, :H],        # feature[1]
        l2[:B, :H],        # feature[2]
        l3[:B, :H],        # feature[3]
        l4[:B, :H],        # feature[4]
        out,               # feature[5]
    ]
    return out, features


def init_params(key, H):
    """Deterministic init matching nn.Linear(bias=False) weight shapes."""
    ks = jax.random.split(key, 5)

    def lin(k, out_f, in_f):
        bound = 1.0 / (in_f ** 0.5)
        return jax.random.uniform(k, (out_f, in_f), jnp.float32, -bound, bound)

    return {
        "fc1": lin(ks[0], H, IN_FEATURES),
        "fc2": lin(ks[1], H, H),
        "fc3": lin(ks[2], H, H),
        "fc4": lin(ks[3], H, H),
        "fc5": lin(ks[4], OUT_FEATURES, H),
    }


if __name__ == "__main__":
    key = jax.random.PRNGKey(0)
    k_x, k_p = jax.random.split(key)

    B, H = 2, 32
    x = jax.random.normal(k_x, (B, 1, 28, 28), jnp.float32)  # NCHW
    params = init_params(k_p, H)
    prepared = prepare_params(params)  # hoisted transpose/pad/cast

    out, feats = fcmulti_feature_forward(x, prepared)
    jax.block_until_ready(out)

    # Pure-JAX reference that mirrors the kernel's bf16-in / f32-accum math.
    bf = jnp.bfloat16
    xf = x.reshape(B, -1)
    r = jnp.maximum(jnp.dot(xf.astype(bf), params["fc1"].T.astype(bf),
                            preferred_element_type=jnp.float32), 0.0)
    r = jnp.maximum(jnp.dot(r.astype(bf), params["fc2"].T.astype(bf),
                            preferred_element_type=jnp.float32), 0.0)
    r = jnp.maximum(jnp.dot(r.astype(bf), params["fc3"].T.astype(bf),
                            preferred_element_type=jnp.float32), 0.0)
    r4 = jnp.maximum(jnp.dot(r.astype(bf), params["fc4"].T.astype(bf),
                             preferred_element_type=jnp.float32), 0.0)
    ref = jnp.dot(r4.astype(bf), params["fc5"].T.astype(bf),
                  preferred_element_type=jnp.float32)

    assert out.shape == (B, OUT_FEATURES)
    assert feats[0].shape == (B, IN_FEATURES)
    assert all(f.shape == (B, H) for f in feats[1:5])
    assert feats[5].shape == (B, OUT_FEATURES)
    assert jnp.allclose(feats[4], r4, atol=1e-3, rtol=1e-3)
    assert jnp.allclose(out, ref, atol=1e-3, rtol=1e-3)

    print("KERNEL_OK")
</pallas_src>

<mosaic_0001>
module attributes {stable_mosaic.version = 11 : i64} {
  func.func @_mlp_kernel(%arg0: i32, %arg1: memref<16x896xbf16, #tpu.memory_space<vmem>>, %arg2: memref<896x128xbf16, #tpu.memory_space<vmem>>, %arg3: memref<128x128xbf16, #tpu.memory_space<vmem>>, %arg4: memref<128x128xbf16, #tpu.memory_space<vmem>>, %arg5: memref<128x128xbf16, #tpu.memory_space<vmem>>, %arg6: memref<128x128xbf16, #tpu.memory_space<vmem>>, %arg7: memref<16x128xf32, #tpu.memory_space<vmem>>, %arg8: memref<16x128xf32, #tpu.memory_space<vmem>>, %arg9: memref<16x128xf32, #tpu.memory_space<vmem>>, %arg10: memref<16x128xf32, #tpu.memory_space<vmem>>, %arg11: memref<16x128xf32, #tpu.memory_space<vmem>>) attributes {dimension_semantics = [#tpu.dimension_semantics<parallel>], iteration_bounds = array<i64: 1>, scalar_prefetch = 0 : i64, scratch_operands = 0 : i64, tpu.core_type = #tpu.core_type<tc>, window_params = [{transform_indices = @transform_0, window_bounds = array<i64: 16, 896>}, {pipeline_mode = #tpu.pipeline_mode<synchronous>, transform_indices = @transform_1, window_bounds = array<i64: 896, 128>}, {pipeline_mode = #tpu.pipeline_mode<synchronous>, transform_indices = @transform_2, window_bounds = array<i64: 128, 128>}, {pipeline_mode = #tpu.pipeline_mode<synchronous>, transform_indices = @transform_3, window_bounds = array<i64: 128, 128>}, {pipeline_mode = #tpu.pipeline_mode<synchronous>, transform_indices = @transform_4, window_bounds = array<i64: 128, 128>}, {pipeline_mode = #tpu.pipeline_mode<synchronous>, transform_indices = @transform_5, window_bounds = array<i64: 128, 128>}, {transform_indices = @transform_6, window_bounds = array<i64: 16, 128>}, {transform_indices = @transform_7, window_bounds = array<i64: 16, 128>}, {transform_indices = @transform_8, window_bounds = array<i64: 16, 128>}, {transform_indices = @transform_9, window_bounds = array<i64: 16, 128>}, {transform_indices = @transform_10, window_bounds = array<i64: 16, 128>}]} {
    %c0 = arith.constant 0 : index
    %c0_0 = arith.constant 0 : index
    %0 = vector.load %arg1[%c0, %c0_0] : memref<16x896xbf16, #tpu.memory_space<vmem>>, vector<16x896xbf16>
    %c0_1 = arith.constant 0 : index
    %c0_2 = arith.constant 0 : index
    %1 = vector.load %arg2[%c0_1, %c0_2] : memref<896x128xbf16, #tpu.memory_space<vmem>>, vector<896x128xbf16>
    %cst = arith.constant dense<0.000000e+00> : vector<16x128xf32>
    %2 = tpu.matmul %0, %1, %cst {dimension_numbers = #tpu.dot_dimension_numbers<[1], [0], [0], [1], [0, 0, 1, 1], [], []>} : vector<16x896xbf16>, vector<896x128xbf16>, vector<16x128xf32> -> vector<16x128xf32>
    %cst_3 = arith.constant 0.000000e+00 : f32
    %3 = vector.broadcast %cst_3 : f32 to vector<16x128xf32>
    %4 = arith.maximumf %2, %3 : vector<16x128xf32>
    %c0_4 = arith.constant 0 : index
    %c0_5 = arith.constant 0 : index
    %5 = vector.load %arg7[%c0_4, %c0_5] : memref<16x128xf32, #tpu.memory_space<vmem>>, vector<16x128xf32>
    tpu.vector_store %arg7[%c0_4, %c0_5], %4 {strides = array<i32>} : memref<16x128xf32, #tpu.memory_space<vmem>>, vector<16x128xf32>,
    %6 = arith.truncf %4 : vector<16x128xf32> to vector<16x128xbf16>
    %c0_6 = arith.constant 0 : index
    %c0_7 = arith.constant 0 : index
    %7 = vector.load %arg3[%c0_6, %c0_7] : memref<128x128xbf16, #tpu.memory_space<vmem>>, vector<128x128xbf16>
    %cst_8 = arith.constant dense<0.000000e+00> : vector<16x128xf32>
    %8 = tpu.matmul %6, %7, %cst_8 {dimension_numbers = #tpu.dot_dimension_numbers<[1], [0], [0], [1], [0, 0, 1, 1], [], []>} : vector<16x128xbf16>, vector<128x128xbf16>, vector<16x128xf32> -> vector<16x128xf32>
    %cst_9 = arith.constant 0.000000e+00 : f32
    %9 = vector.broadcast %cst_9 : f32 to vector<16x128xf32>
    %10 = arith.maximumf %8, %9 : vector<16x128xf32>
    %c0_10 = arith.constant 0 : index
    %c0_11 = arith.constant 0 : index
    %11 = vector.load %arg8[%c0_10, %c0_11] : memref<16x128xf32, #tpu.memory_space<vmem>>, vector<16x128xf32>
    tpu.vector_store %arg8[%c0_10, %c0_11], %10 {strides = array<i32>} : memref<16x128xf32, #tpu.memory_space<vmem>>, vector<16x128xf32>,
    %12 = arith.truncf %10 : vector<16x128xf32> to vector<16x128xbf16>
    %c0_12 = arith.constant 0 : index
    %c0_13 = arith.constant 0 : index
    %13 = vector.load %arg4[%c0_12, %c0_13] : memref<128x128xbf16, #tpu.memory_space<vmem>>, vector<128x128xbf16>
    %cst_14 = arith.constant dense<0.000000e+00> : vector<16x128xf32>
    %14 = tpu.matmul %12, %13, %cst_14 {dimension_numbers = #tpu.dot_dimension_numbers<[1], [0], [0], [1], [0, 0, 1, 1], [], []>} : vector<16x128xbf16>, vector<128x128xbf16>, vector<16x128xf32> -> vector<16x128xf32>
    %cst_15 = arith.constant 0.000000e+00 : f32
    %15 = vector.broadcast %cst_15 : f32 to vector<16x128xf32>
    %16 = arith.maximumf %14, %15 : vector<16x128xf32>
    %c0_16 = arith.constant 0 : index
    %c0_17 = arith.constant 0 : index
    %17 = vector.load %arg9[%c0_16, %c0_17] : memref<16x128xf32, #tpu.memory_space<vmem>>, vector<16x128xf32>
    tpu.vector_store %arg9[%c0_16, %c0_17], %16 {strides = array<i32>} : memref<16x128xf32, #tpu.memory_space<vmem>>, vector<16x128xf32>,
    %18 = arith.truncf %16 : vector<16x128xf32> to vector<16x128xbf16>
    %c0_18 = arith.constant 0 : index
    %c0_19 = arith.constant 0 : index
    %19 = vector.load %arg5[%c0_18, %c0_19] : memref<128x128xbf16, #tpu.memory_space<vmem>>, vector<128x128xbf16>
    %cst_20 = arith.constant dense<0.000000e+00> : vector<16x128xf32>
    %20 = tpu.matmul %18, %19, %cst_20 {dimension_numbers = #tpu.dot_dimension_numbers<[1], [0], [0], [1], [0, 0, 1, 1], [], []>} : vector<16x128xbf16>, vector<128x128xbf16>, vector<16x128xf32> -> vector<16x128xf32>
    %cst_21 = arith.constant 0.000000e+00 : f32
    %21 = vector.broadcast %cst_21 : f32 to vector<16x128xf32>
    %22 = arith.maximumf %20, %21 : vector<16x128xf32>
    %c0_22 = arith.constant 0 : index
    %c0_23 = arith.constant 0 : index
    %23 = vector.load %arg10[%c0_22, %c0_23] : memref<16x128xf32, #tpu.memory_space<vmem>>, vector<16x128xf32>
    tpu.vector_store %arg10[%c0_22, %c0_23], %22 {strides = array<i32>} : memref<16x128xf32, #tpu.memory_space<vmem>>, vector<16x128xf32>,
    %24 = arith.truncf %22 : vector<16x128xf32> to vector<16x128xbf16>
    %c0_24 = arith.constant 0 : index
    %c0_25 = arith.constant 0 : index
    %25 = vector.load %arg6[%c0_24, %c0_25] : memref<128x128xbf16, #tpu.memory_space<vmem>>, vector<128x128xbf16>
    %cst_26 = arith.constant dense<0.000000e+00> : vector<16x128xf32>
    %26 = tpu.matmul %24, %25, %cst_26 {dimension_numbers = #tpu.dot_dimension_numbers<[1], [0], [0], [1], [0, 0, 1, 1], [], []>} : vector<16x128xbf16>, vector<128x128xbf16>, vector<16x128xf32> -> vector<16x128xf32>
    %c0_27 = arith.constant 0 : index
    %c0_28 = arith.constant 0 : index
    %27 = vector.load %arg11[%c0_27, %c0_28] : memref<16x128xf32, #tpu.memory_space<vmem>>, vector<16x128xf32>
    tpu.vector_store %arg11[%c0_27, %c0_28], %26 {strides = array<i32>} : memref<16x128xf32, #tpu.memory_space<vmem>>, vector<16x128xf32>,
    return
  }
  func.func @transform_0(%arg0: i32) -> (i32, i32) {
    %c0_i32 = arith.constant 0 : i32
    %c0_i32_0 = arith.constant 0 : i32
    return %arg0, %c0_i32 : i32, i32
  }
  func.func @transform_1(%arg0: i32) -> (i32, i32) {
    %c0_i32 = arith.constant 0 : i32
    %c0_i32_0 = arith.constant 0 : i32
    %c0_i32_1 = arith.constant 0 : i32
    return %c0_i32, %c0_i32_0 : i32, i32
  }
  func.func @transform_2(%arg0: i32) -> (i32, i32) {
    %c0_i32 = arith.constant 0 : i32
    %c0_i32_0 = arith.constant 0 : i32
    %c0_i32_1 = arith.constant 0 : i32
    return %c0_i32, %c0_i32_0 : i32, i32
  }
  func.func @transform_3(%arg0: i32) -> (i32, i32) {
    %c0_i32 = arith.constant 0 : i32
    %c0_i32_0 = arith.constant 0 : i32
    %c0_i32_1 = arith.constant 0 : i32
    return %c0_i32, %c0_i32_0 : i32, i32
  }
  func.func @transform_4(%arg0: i32) -> (i32, i32) {
    %c0_i32 = arith.constant 0 : i32
    %c0_i32_0 = arith.constant 0 : i32
    %c0_i32_1 = arith.constant 0 : i32
    return %c0_i32, %c0_i32_0 : i32, i32
  }
  func.func @transform_5(%arg0: i32) -> (i32, i32) {
    %c0_i32 = arith.constant 0 : i32
    %c0_i32_0 = arith.constant 0 : i32
    %c0_i32_1 = arith.constant 0 : i32
    return %c0_i32, %c0_i32_0 : i32, i32
  }
  func.func @transform_6(%arg0: i32) -> (i32, i32) {
    %c0_i32 = arith.constant 0 : i32
    %c0_i32_0 = arith.constant 0 : i32
    return %arg0, %c0_i32 : i32, i32
  }
  func.func @transform_7(%arg0: i32) -> (i32, i32) {
    %c0_i32 = arith.constant 0 : i32
    %c0_i32_0 = arith.constant 0 : i32
    return %arg0, %c0_i32 : i32, i32
  }
  func.func @transform_8(%arg0: i32) -> (i32, i32) {
    %c0_i32 = arith.constant 0 : i32
    %c0_i32_0 = arith.constant 0 : i32
    return %arg0, %c0_i32 : i32, i32
  }
  func.func @transform_9(%arg0: i32) -> (i32, i32) {
    %c0_i32 = arith.constant 0 : i32
    %c0_i32_0 = arith.constant 0 : i32
    return %arg0, %c0_i32 : i32, i32
  }
  func.func @transform_10(%arg0: i32) -> (i32, i32) {
    %c0_i32 = arith.constant 0 : i32
    %c0_i32_0 = arith.constant 0 : i32
    return %arg0, %c0_i32 : i32, i32
  }
}

</mosaic_0001>

<llo_original>
// kernel: tpu_custom_call.1
$region0: #{tpu_custom_call.1}
  #allocation0 [shape = 'u32[]', space=smem, size = 0x4, offset = 0x4, fixed_abs, tag = 'smem constant byte address 0x4 - core index']
  #allocation1 [shape = 'u32[144,128]{1,0:T(1,128)}', space=vmem, size = 0x12000, scoped, tag = 'internal scratch']
  %s0 = inlined_call_operand.hbm [shape: bf16[16,896], index: 0, kind: input, shape index: {}]
  %s1 = inlined_call_operand.hbm [shape: bf16[896,128], index: 1, kind: input, shape index: {}]
  %s2 = inlined_call_operand.hbm [shape: bf16[128,128], index: 2, kind: input, shape index: {}]
  %s3 = inlined_call_operand.hbm [shape: bf16[128,128], index: 3, kind: input, shape index: {}]
  %s4 = inlined_call_operand.hbm [shape: bf16[128,128], index: 4, kind: input, shape index: {}]
  %s5 = inlined_call_operand.hbm [shape: bf16[128,128], index: 5, kind: input, shape index: {}]
  %s6 = inlined_call_operand.hbm [shape: f32[16,128], index: 6, kind: output, shape index: {0}]
  %s7 = inlined_call_operand.hbm [shape: f32[16,128], index: 7, kind: output, shape index: {1}]
  %s8 = inlined_call_operand.hbm [shape: f32[16,128], index: 8, kind: output, shape index: {2}]
  %s9 = inlined_call_operand.hbm [shape: f32[16,128], index: 9, kind: output, shape index: {3}]
  %s10 = inlined_call_operand.hbm [shape: f32[16,128], index: 10, kind: output, shape index: {4}]
  %11 = xla_tuple %s6, %s7, %s8, %s9, %s10
  %s12 = sld [smem:[#allocation0]]
  $region90: #{tpu_custom_call.1} parent=0
    _
  %s14 = ssub.s32 1, %s12
  %s15 = scalar_select 0, %s14, %s12
  $region1: #{tpu_custom_call.1} parent=0
    #allocation2 [shape = 'u8[28672]{0}', space=vmem, size = 0x7000, scoped, tag = 'input window, operand 0, single buffered']
    #allocation3 [shape = 's32[1]{0}', space=sflag, size = 0x4, scoped, tag = 'scoped memory for tpu_custom_call.1']
    #allocation4 [shape = 's32[1]{0}', space=sflag, size = 0x4, scoped, tag = 'scoped memory for tpu_custom_call.1']
    #allocation5 [shape = 'u8[229376]{0}', space=vmem, size = 0x38000, scoped, tag = 'input window, operand 1, single buffered']
    #allocation6 [shape = 's32[1]{0}', space=sflag, size = 0x4, scoped, tag = 'scoped memory for tpu_custom_call.1']
    #allocation7 [shape = 'u8[32768]{0}', space=vmem, size = 0x8000, scoped, tag = 'input window, operand 2, single buffered']
    #allocation8 [shape = 'u8[32768]{0}', space=vmem, size = 0x8000, scoped, tag = 'input window, operand 3, single buffered']
    #allocation9 [shape = 's32[1]{0}', space=sflag, size = 0x4, scoped, tag = 'scoped memory for tpu_custom_call.1']
    #allocation10 [shape = 'u8[32768]{0}', space=vmem, size = 0x8000, scoped, tag = 'input window, operand 4, single buffered']
    #allocation11 [shape = 'u8[32768]{0}', space=vmem, size = 0x8000, scoped, tag = 'input window, operand 5, single buffered']
    #allocation12 [shape = 's32[1]{0}', space=sflag, size = 0x4, scoped, tag = 'scoped memory for tpu_custom_call.1']
    #allocation13 [shape = 'u8[8192]{0}', space=vmem, size = 0x2000, scoped, tag = 'output window, operand 0, single buffered']
    #allocation14 [shape = 'u8[8192]{0}', space=vmem, size = 0x2000, scoped, tag = 'output window, operand 1, single buffered']
    #allocation15 [shape = 's32[1]{0}', space=sflag, size = 0x4, scoped, tag = 'scoped memory for tpu_custom_call.1']
    #allocation16 [shape = 'u8[8192]{0}', space=vmem, size = 0x2000, scoped, tag = 'output window, operand 2, single buffered']
    #allocation17 [shape = 'u8[8192]{0}', space=vmem, size = 0x2000, scoped, tag = 'output window, operand 3, single buffered']
    #allocation18 [shape = 's32[1]{0}', space=sflag, size = 0x4, scoped, tag = 'scoped memory for tpu_custom_call.1']
    #allocation19 [shape = 'u8[8192]{0}', space=vmem, size = 0x2000, scoped, tag = 'output window, operand 4, single buffered']
    %16 = vsyncpa [#allocation3], 0
    %17 = vsyncpa [#allocation6], 0
    %18 = vsyncpa [#allocation9], 0
    %19 = vsyncpa [#allocation12], 0
    %20 = vsyncpa [#allocation4], 0
    %21 = vsyncpa [#allocation15], 0
    %22 = vsyncpa [#allocation18], 0
    // Predicated region
    $region2: #{tpu_custom_call.1} parent=1 // pred_check
      _
    $region3: #{tpu_custom_call.1} parent=1 // pred_check_branch
      %24 = sbr.rel (0) target = $region5
    $region4: #{tpu_custom_call.1} parent=1 // pred_region
      %s26 = ssub.s32 896, 896
      %27 = vsyncadd [#allocation3], %s26
      %s28 = sshll.u32 [#allocation2], 4
      %s29 = int_to_ptr.vmem [resolvable:$true] %s28
      %34 = dma.hbm_to_vmem [thread:$0]  %s0, 896, %s29, [#allocation3], 448, 448, 28
    $region5: #{tpu_custom_call.1} parent=1 // pred_fallthru
      _
    // Predicated region
    $region6: #{tpu_custom_call.1} parent=1 // pred_check
      _
    $region7: #{tpu_custom_call.1} parent=1 // pred_check_branch
      %36 = sbr.rel (0) target = $region9
    $region8: #{tpu_custom_call.1} parent=1 // pred_region
      %s38 = ssub.s32 7168, 7168
      %39 = vsyncadd [#allocation6], %s38
      %s40 = sshll.u32 [#allocation5], 4
      %s41 = int_to_ptr.vmem [resolvable:$true] %s40
      %46 = dma.hbm_to_vmem [thread:$0]  %s1, 7168, %s41, [#allocation6], 64, 64, 4
    $region9: #{tpu_custom_call.1} parent=1 // pred_fallthru
      _
    // Predicated region
    $region10: #{tpu_custom_call.1} parent=1 // pred_check
      _
    $region11: #{tpu_custom_call.1} parent=1 // pred_check_branch
      %48 = sbr.rel (0) target = $region13
    $region12: #{tpu_custom_call.1} parent=1 // pred_region
      %s50 = ssub.s32 1024, 1024
      %51 = vsyncadd [#allocation6], %s50
      %s52 = sshll.u32 [#allocation7], 4
      %s53 = int_to_ptr.vmem [resolvable:$true] %s52
      %58 = dma.hbm_to_vmem [thread:$0]  %s2, 1024, %s53, [#allocation6], 64, 64, 4
    $region13: #{tpu_custom_call.1} parent=1 // pred_fallthru
      _
    // Predicated region
    $region14: #{tpu_custom_call.1} parent=1 // pred_check
      _
    $region15: #{tpu_custom_call.1} parent=1 // pred_check_branch
      %60 = sbr.rel (0) target = $region17
    $region16: #{tpu_custom_call.1} parent=1 // pred_region
      %s62 = ssub.s32 1024, 1024
      %63 = vsyncadd [#allocation9], %s62
      %s64 = sshll.u32 [#allocation8], 4
      %s65 = int_to_ptr.vmem [resolvable:$true] %s64
      %70 = dma.hbm_to_vmem [thread:$0]  %s3, 1024, %s65, [#allocation9], 64, 64, 4
    $region17: #{tpu_custom_call.1} parent=1 // pred_fallthru
      _
    // Predicated region
    $region18: #{tpu_custom_call.1} parent=1 // pred_check
      _
    $region19: #{tpu_custom_call.1} parent=1 // pred_check_branch
      %72 = sbr.rel (0) target = $region21
    $region20: #{tpu_custom_call.1} parent=1 // pred_region
      %s74 = ssub.s32 1024, 1024
      %75 = vsyncadd [#allocation9], %s74
      %s76 = sshll.u32 [#allocation10], 4
      %s77 = int_to_ptr.vmem [resolvable:$true] %s76
      %82 = dma.hbm_to_vmem [thread:$0]  %s4, 1024, %s77, [#allocation9], 64, 64, 4
    $region21: #{tpu_custom_call.1} parent=1 // pred_fallthru
      _
    // Predicated region
    $region22: #{tpu_custom_call.1} parent=1 // pred_check
      _
    $region23: #{tpu_custom_call.1} parent=1 // pred_check_branch
      %84 = sbr.rel (0) target = $region25
    $region24: #{tpu_custom_call.1} parent=1 // pred_region
      %s86 = ssub.s32 1024, 1024
      %87 = vsyncadd [#allocation12], %s86
      %s88 = sshll.u32 [#allocation11], 4
      %s89 = int_to_ptr.vmem [resolvable:$true] %s88
      %94 = dma.hbm_to_vmem [thread:$0]  %s5, 1024, %s89, [#allocation12], 64, 64, 4
    $region25: #{tpu_custom_call.1} parent=1 // pred_fallthru
      _
    // Predicated region
    $region26: #{tpu_custom_call.1} parent=1 // pred_check
      _
    $region27: #{tpu_custom_call.1} parent=1 // pred_check_branch
      %96 = sbr.rel (0) target = $region29
    $region28: #{tpu_custom_call.1} parent=1 // pred_region
      %97 = dma.done [#allocation3], 896
    $region29: #{tpu_custom_call.1} parent=1 // pred_fallthru
      _
    // Predicated region
    $region30: #{tpu_custom_call.1} parent=1 // pred_check
      _
    $region31: #{tpu_custom_call.1} parent=1 // pred_check_branch
      %99 = sbr.rel (0) target = $region33
    $region32: #{tpu_custom_call.1} parent=1 // pred_region
      %100 = dma.done [#allocation6], 7168
    $region33: #{tpu_custom_call.1} parent=1 // pred_fallthru
      _
    // Predicated region
    $region34: #{tpu_custom_call.1} parent=1 // pred_check
      _
    $region35: #{tpu_custom_call.1} parent=1 // pred_check_branch
      %102 = sbr.rel (0) target = $region37
    $region36: #{tpu_custom_call.1} parent=1 // pred_region
      %103 = dma.done [#allocation6], 1024
    $region37: #{tpu_custom_call.1} parent=1 // pred_fallthru
      _
    // Predicated region
    $region38: #{tpu_custom_call.1} parent=1 // pred_check
      _
    $region39: #{tpu_custom_call.1} parent=1 // pred_check_branch
      %105 = sbr.rel (0) target = $region41
    $region40: #{tpu_custom_call.1} parent=1 // pred_region
      %106 = dma.done [#allocation9], 1024
    $region41: #{tpu_custom_call.1} parent=1 // pred_fallthru
      _
    // Predicated region
    $region42: #{tpu_custom_call.1} parent=1 // pred_check
      _
    $region43: #{tpu_custom_call.1} parent=1 // pred_check_branch
      %108 = sbr.rel (0) target = $region45
    $region44: #{tpu_custom_call.1} parent=1 // pred_region
      %109 = dma.done [#allocation9], 1024
    $region45: #{tpu_custom_call.1} parent=1 // pred_fallthru
      _
    // Predicated region
    $region46: #{tpu_custom_call.1} parent=1 // pred_check
      _
    $region47: #{tpu_custom_call.1} parent=1 // pred_check_branch
      %111 = sbr.rel (0) target = $region49
    $region48: #{tpu_custom_call.1} parent=1 // pred_region
      %112 = dma.done [#allocation12], 1024
    $region49: #{tpu_custom_call.1} parent=1 // pred_fallthru
      _
    %v114 = vld [vmem:[#allocation2] sm:$0xff]
    %v115 = vld [vmem:[#allocation2 + $0x8] sm:$0xff]
    %v116 = vld [vmem:[#allocation2 + $0x10] sm:$0xff]
    %v117 = vld [vmem:[#allocation2 + $0x18] sm:$0xf]
    %v118 = vld [vmem:[#allocation2 + $0x1c] sm:$0xff]
    %v119 = vld [vmem:[#allocation2 + $0x24] sm:$0xff]
    %v120 = vld [vmem:[#allocation2 + $0x2c] sm:$0xff]
    %v121 = vld [vmem:[#allocation2 + $0x34] sm:$0xf]
    %v122 = vld [vmem:[#allocation5] sm:$0xf]
    %v123 = vld [vmem:[#allocation5 + $0x4] sm:$0xf]
    %v124 = vld [vmem:[#allocation5 + $0x8] sm:$0xf]
    %v125 = vld [vmem:[#allocation5 + $0xc] sm:$0xf]
    %v126 = vld [vmem:[#allocation5 + $0x10] sm:$0xf]
    %v127 = vld [vmem:[#allocation5 + $0x14] sm:$0xf]
    %v128 = vld [vmem:[#allocation5 + $0x18] sm:$0xf]
    %v129 = vld [vmem:[#allocation5 + $0x1c] sm:$0xf]
    %v130 = vld [vmem:[#allocation5 + $0x20] sm:$0xf]
    %v131 = vld [vmem:[#allocation5 + $0x24] sm:$0xf]
    %v132 = vld [vmem:[#allocation5 + $0x28] sm:$0xf]
    %v133 = vld [vmem:[#allocation5 + $0x2c] sm:$0xf]
    %v134 = vld [vmem:[#allocation5 + $0x30] sm:$0xf]
    %v135 = vld [vmem:[#allocation5 + $0x34] sm:$0xf]
    %v136 = vld [vmem:[#allocation5 + $0x38] sm:$0xf]
    %v137 = vld [vmem:[#allocation5 + $0x3c] sm:$0xf]
    %v138 = vld [vmem:[#allocation5 + $0x40] sm:$0xf]
    %v139 = vld [vmem:[#allocation5 + $0x44] sm:$0xf]
    %v140 = vld [vmem:[#allocation5 + $0x48] sm:$0xf]
    %v141 = vld [vmem:[#allocation5 + $0x4c] sm:$0xf]
    %v142 = vld [vmem:[#allocation5 + $0x50] sm:$0xf]
    %v143 = vld [vmem:[#allocation5 + $0x54] sm:$0xf]
    %v144 = vld [vmem:[#allocation5 + $0x58] sm:$0xf]
    %v145 = vld [vmem:[#allocation5 + $0x5c] sm:$0xf]
    %v146 = vld [vmem:[#allocation5 + $0x60] sm:$0xf]
    %v147 = vld [vmem:[#allocation5 + $0x64] sm:$0xf]
    %v148 = vld [vmem:[#allocation5 + $0x68] sm:$0xf]
    %v149 = vld [vmem:[#allocation5 + $0x6c] sm:$0xf]
    %v150 = vld [vmem:[#allocation5 + $0x70] sm:$0xf]
    %v151 = vld [vmem:[#allocation5 + $0x74] sm:$0xf]
    %v152 = vld [vmem:[#allocation5 + $0x78] sm:$0xf]
    %v153 = vld [vmem:[#allocation5 + $0x7c] sm:$0xf]
    %v154 = vld [vmem:[#allocation5 + $0x80] sm:$0xf]
    %v155 = vld [vmem:[#allocation5 + $0x84] sm:$0xf]
    %v156 = vld [vmem:[#allocation5 + $0x88] sm:$0xf]
    %v157 = vld [vmem:[#allocation5 + $0x8c] sm:$0xf]
    %v158 = vld [vmem:[#allocation5 + $0x90] sm:$0xf]
    %v159 = vld [vmem:[#allocation5 + $0x94] sm:$0xf]
    %v160 = vld [vmem:[#allocation5 + $0x98] sm:$0xf]
    %v161 = vld [vmem:[#allocation5 + $0x9c] sm:$0xf]
    %v162 = vld [vmem:[#allocation5 + $0xa0] sm:$0xf]
    %v163 = vld [vmem:[#allocation5 + $0xa4] sm:$0xf]
    %v164 = vld [vmem:[#allocation5 + $0xa8] sm:$0xf]
    %v165 = vld [vmem:[#allocation5 + $0xac] sm:$0xf]
    %v166 = vld [vmem:[#allocation5 + $0xb0] sm:$0xf]
    %v167 = vld [vmem:[#allocation5 + $0xb4] sm:$0xf]
    %v168 = vld [vmem:[#allocation5 + $0xb8] sm:$0xf]
    %v169 = vld [vmem:[#allocation5 + $0xbc] sm:$0xf]
    %v170 = vld [vmem:[#allocation5 + $0xc0] sm:$0xf]
    %v171 = vld [vmem:[#allocation5 + $0xc4] sm:$0xf]
    %v172 = vld [vmem:[#allocation5 + $0xc8] sm:$0xf]
    %v173 = vld [vmem:[#allocation5 + $0xcc] sm:$0xf]
    %v174 = vld [vmem:[#allocation5 + $0xd0] sm:$0xf]
    %v175 = vld [vmem:[#allocation5 + $0xd4] sm:$0xf]
    %v176 = vld [vmem:[#allocation5 + $0xd8] sm:$0xf]
    %v177 = vld [vmem:[#allocation5 + $0xdc] sm:$0xf]
    %v178 = vld [vmem:[#allocation5 + $0xe0] sm:$0xf]
    %v179 = vld [vmem:[#allocation5 + $0xe4] sm:$0xf]
    %v180 = vld [vmem:[#allocation5 + $0xe8] sm:$0xf]
    %v181 = vld [vmem:[#allocation5 + $0xec] sm:$0xf]
    %v182 = vld [vmem:[#allocation5 + $0xf0] sm:$0xf]
    %v183 = vld [vmem:[#allocation5 + $0xf4] sm:$0xf]
    %v184 = vld [vmem:[#allocation5 + $0xf8] sm:$0xf]
    %v185 = vld [vmem:[#allocation5 + $0xfc] sm:$0xf]
    %v186 = vld [vmem:[#allocation5 + $0x100] sm:$0xf]
    %v187 = vld [vmem:[#allocation5 + $0x104] sm:$0xf]
    %v188 = vld [vmem:[#allocation5 + $0x108] sm:$0xf]
    %v189 = vld [vmem:[#allocation5 + $0x10c] sm:$0xf]
    %v190 = vld [vmem:[#allocation5 + $0x110] sm:$0xf]
    %v191 = vld [vmem:[#allocation5 + $0x114] sm:$0xf]
    %v192 = vld [vmem:[#allocation5 + $0x118] sm:$0xf]
    %v193 = vld [vmem:[#allocation5 + $0x11c] sm:$0xf]
    %v194 = vld [vmem:[#allocation5 + $0x120] sm:$0xf]
    %v195 = vld [vmem:[#allocation5 + $0x124] sm:$0xf]
    %v196 = vld [vmem:[#allocation5 + $0x128] sm:$0xf]
    %v197 = vld [vmem:[#allocation5 + $0x12c] sm:$0xf]
    %v198 = vld [vmem:[#allocation5 + $0x130] sm:$0xf]
    %v199 = vld [vmem:[#allocation5 + $0x134] sm:$0xf]
    %v200 = vld [vmem:[#allocation5 + $0x138] sm:$0xf]
    %v201 = vld [vmem:[#allocation5 + $0x13c] sm:$0xf]
    %v202 = vld [vmem:[#allocation5 + $0x140] sm:$0xf]
    %v203 = vld [vmem:[#allocation5 + $0x144] sm:$0xf]
    %v204 = vld [vmem:[#allocation5 + $0x148] sm:$0xf]
    %v205 = vld [vmem:[#allocation5 + $0x14c] sm:$0xf]
    %v206 = vld [vmem:[#allocation5 + $0x150] sm:$0xf]
    %v207 = vld [vmem:[#allocation5 + $0x154] sm:$0xf]
    %v208 = vld [vmem:[#allocation5 + $0x158] sm:$0xf]
    %v209 = vld [vmem:[#allocation5 + $0x15c] sm:$0xf]
    %v210 = vld [vmem:[#allocation5 + $0x160] sm:$0xf]
    %v211 = vld [vmem:[#allocation5 + $0x164] sm:$0xf]
    %v212 = vld [vmem:[#allocation5 + $0x168] sm:$0xf]
    %v213 = vld [vmem:[#allocation5 + $0x16c] sm:$0xf]
    %v214 = vld [vmem:[#allocation5 + $0x170] sm:$0xf]
    %v215 = vld [vmem:[#allocation5 + $0x174] sm:$0xf]
    %v216 = vld [vmem:[#allocation5 + $0x178] sm:$0xf]
    %v217 = vld [vmem:[#allocation5 + $0x17c] sm:$0xf]
    %v218 = vld [vmem:[#allocation5 + $0x180] sm:$0xf]
    %v219 = vld [vmem:[#allocation5 + $0x184] sm:$0xf]
    %v220 = vld [vmem:[#allocation5 + $0x188] sm:$0xf]
    %v221 = vld [vmem:[#allocation5 + $0x18c] sm:$0xf]
    %v222 = vld [vmem:[#allocation5 + $0x190] sm:$0xf]
    %v223 = vld [vmem:[#allocation5 + $0x194] sm:$0xf]
    %v224 = vld [vmem:[#allocation5 + $0x198] sm:$0xf]
    %v225 = vld [vmem:[#allocation5 + $0x19c] sm:$0xf]
    %v226 = vld [vmem:[#allocation5 + $0x1a0] sm:$0xf]
    %v227 = vld [vmem:[#allocation5 + $0x1a4] sm:$0xf]
    %v228 = vld [vmem:[#allocation5 + $0x1a8] sm:$0xf]
    %v229 = vld [vmem:[#allocation5 + $0x1ac] sm:$0xf]
    %v230 = vld [vmem:[#allocation5 + $0x1b0] sm:$0xf]
    %v231 = vld [vmem:[#allocation5 + $0x1b4] sm:$0xf]
    %v232 = vld [vmem:[#allocation5 + $0x1b8] sm:$0xf]
    %v233 = vld [vmem:[#allocation5 + $0x1bc] sm:$0xf]
    %v242 = vunpack.c.l.b16 %v114
    %v243 = vunpack.c.h.b16 %v114
    %v244 = vunpack.c.l.b16 %v115
    %v245 = vunpack.c.h.b16 %v115
    %v246 = vunpack.c.l.b16 %v116
    %v247 = vunpack.c.h.b16 %v116
    %v248 = vunpack.c.l.b16 %v117
    %v249 = vunpack.c.l.b16 %v118
    %v250 = vunpack.c.h.b16 %v118
    %v251 = vunpack.c.l.b16 %v119
    %v252 = vunpack.c.h.b16 %v119
    %v253 = vunpack.c.l.b16 %v120
    %v254 = vunpack.c.h.b16 %v120
    %v255 = vunpack.c.l.b16 %v121
    %v256 = vpack.c.b16 %v249, %v242
    %v257 = vpack.c.b16 %v250, %v243
    %v258 = vpack.c.b16 %v251, %v244
    %v259 = vpack.c.b16 %v252, %v245
    %v260 = vpack.c.b16 %v253, %v246
    %v261 = vpack.c.b16 %v254, %v247
    %v262 = vpack.c.b16 %v255, %v248
    %v382 = vunpack.c.l.b16 %v122
    %v383 = vunpack.c.l.b16 %v123
    %v384 = vunpack.c.l.b16 %v124
    %v385 = vunpack.c.l.b16 %v125
    %v386 = vunpack.c.l.b16 %v126
    %v387 = vunpack.c.l.b16 %v127
    %v388 = vunpack.c.l.b16 %v128
    %v389 = vunpack.c.l.b16 %v129
    %v390 = vunpack.c.l.b16 %v130
    %v391 = vunpack.c.l.b16 %v131
    %v392 = vunpack.c.l.b16 %v132
    %v393 = vunpack.c.l.b16 %v133
    %v394 = vunpack.c.l.b16 %v134
    %v395 = vunpack.c.l.b16 %v135
    %v396 = vunpack.c.l.b16 %v136
    %v397 = vunpack.c.l.b16 %v137
    %v398 = vunpack.c.l.b16 %v138
    %v399 = vunpack.c.l.b16 %v139
    %v400 = vunpack.c.l.b16 %v140
    %v401 = vunpack.c.l.b16 %v141
    %v402 = vunpack.c.l.b16 %v142
    %v403 = vunpack.c.l.b16 %v143
    %v404 = vunpack.c.l.b16 %v144
    %v405 = vunpack.c.l.b16 %v145
    %v406 = vunpack.c.l.b16 %v146
    %v407 = vunpack.c.l.b16 %v147
    %v408 = vunpack.c.l.b16 %v148
    %v409 = vunpack.c.l.b16 %v149
    %v410 = vunpack.c.l.b16 %v150
    %v411 = vunpack.c.l.b16 %v151
    %v412 = vunpack.c.l.b16 %v152
    %v413 = vunpack.c.l.b16 %v153
    %v414 = vunpack.c.l.b16 %v154
    %v415 = vunpack.c.l.b16 %v155
    %v416 = vunpack.c.l.b16 %v156
    %v417 = vunpack.c.l.b16 %v157
    %v418 = vunpack.c.l.b16 %v158
    %v419 = vunpack.c.l.b16 %v159
    %v420 = vunpack.c.l.b16 %v160
    %v421 = vunpack.c.l.b16 %v161
    %v422 = vunpack.c.l.b16 %v162
    %v423 = vunpack.c.l.b16 %v163
    %v424 = vunpack.c.l.b16 %v164
    %v425 = vunpack.c.l.b16 %v165
    %v426 = vunpack.c.l.b16 %v166
    %v427 = vunpack.c.l.b16 %v167
    %v428 = vunpack.c.l.b16 %v168
    %v429 = vunpack.c.l.b16 %v169
    %v430 = vunpack.c.l.b16 %v170
    %v431 = vunpack.c.l.b16 %v171
    %v432 = vunpack.c.l.b16 %v172
    %v433 = vunpack.c.l.b16 %v173
    %v434 = vunpack.c.l.b16 %v174
    %v435 = vunpack.c.l.b16 %v175
    %v436 = vunpack.c.l.b16 %v176
    %v437 = vunpack.c.l.b16 %v177
    %v438 = vunpack.c.l.b16 %v178
    %v439 = vunpack.c.l.b16 %v179
    %v440 = vunpack.c.l.b16 %v180
    %v441 = vunpack.c.l.b16 %v181
    %v442 = vunpack.c.l.b16 %v182
    %v443 = vunpack.c.l.b16 %v183
    %v444 = vunpack.c.l.b16 %v184
    %v445 = vunpack.c.l.b16 %v185
    %v446 = vunpack.c.l.b16 %v186
    %v447 = vunpack.c.l.b16 %v187
    %v448 = vunpack.c.l.b16 %v188
    %v449 = vunpack.c.l.b16 %v189
    %v450 = vunpack.c.l.b16 %v190
    %v451 = vunpack.c.l.b16 %v191
    %v452 = vunpack.c.l.b16 %v192
    %v453 = vunpack.c.l.b16 %v193
    %v454 = vunpack.c.l.b16 %v194
    %v455 = vunpack.c.l.b16 %v195
    %v456 = vunpack.c.l.b16 %v196
    %v457 = vunpack.c.l.b16 %v197
    %v458 = vunpack.c.l.b16 %v198
    %v459 = vunpack.c.l.b16 %v199
    %v460 = vunpack.c.l.b16 %v200
    %v461 = vunpack.c.l.b16 %v201
    %v462 = vunpack.c.l.b16 %v202
    %v463 = vunpack.c.l.b16 %v203
    %v464 = vunpack.c.l.b16 %v204
    %v465 = vunpack.c.l.b16 %v205
    %v466 = vunpack.c.l.b16 %v206
    %v467 = vunpack.c.l.b16 %v207
    %v468 = vunpack.c.l.b16 %v208
    %v469 = vunpack.c.l.b16 %v209
    %v470 = vunpack.c.l.b16 %v210
    %v471 = vunpack.c.l.b16 %v211
    %v472 = vunpack.c.l.b16 %v212
    %v473 = vunpack.c.l.b16 %v213
    %v474 = vunpack.c.l.b16 %v214
    %v475 = vunpack.c.l.b16 %v215
    %v476 = vunpack.c.l.b16 %v216
    %v477 = vunpack.c.l.b16 %v217
    %v478 = vunpack.c.l.b16 %v218
    %v479 = vunpack.c.l.b16 %v219
    %v480 = vunpack.c.l.b16 %v220
    %v481 = vunpack.c.l.b16 %v221
    %v482 = vunpack.c.l.b16 %v222
    %v483 = vunpack.c.l.b16 %v223
    %v484 = vunpack.c.l.b16 %v224
    %v485 = vunpack.c.l.b16 %v225
    %v486 = vunpack.c.l.b16 %v226
    %v487 = vunpack.c.l.b16 %v227
    %v488 = vunpack.c.l.b16 %v228
    %v489 = vunpack.c.l.b16 %v229
    %v490 = vunpack.c.l.b16 %v230
    %v491 = vunpack.c.l.b16 %v231
    %v492 = vunpack.c.l.b16 %v232
    %v493 = vunpack.c.l.b16 %v233
    %v494 = vpack.c.b16 %v383, %v382
    %v495 = vpack.c.b16 %v385, %v384
    %v496 = vpack.c.b16 %v387, %v386
    %v497 = vpack.c.b16 %v389, %v388
    %v498 = vpack.c.b16 %v391, %v390
    %v499 = vpack.c.b16 %v393, %v392
    %v500 = vpack.c.b16 %v395, %v394
    %v501 = vpack.c.b16 %v397, %v396
    %v502 = vpack.c.b16 %v399, %v398
    %v503 = vpack.c.b16 %v401, %v400
    %v504 = vpack.c.b16 %v403, %v402
    %v505 = vpack.c.b16 %v405, %v404
    %v506 = vpack.c.b16 %v407, %v406
    %v507 = vpack.c.b16 %v409, %v408
    %v508 = vpack.c.b16 %v411, %v410
    %v509 = vpack.c.b16 %v413, %v412
    %v510 = vpack.c.b16 %v415, %v414
    %v511 = vpack.c.b16 %v417, %v416
    %v512 = vpack.c.b16 %v419, %v418
    %v513 = vpack.c.b16 %v421, %v420
    %v514 = vpack.c.b16 %v423, %v422
    %v515 = vpack.c.b16 %v425, %v424
    %v516 = vpack.c.b16 %v427, %v426
    %v517 = vpack.c.b16 %v429, %v428
    %v518 = vpack.c.b16 %v431, %v430
    %v519 = vpack.c.b16 %v433, %v432
    %v520 = vpack.c.b16 %v435, %v434
    %v521 = vpack.c.b16 %v437, %v436
    %v522 = vpack.c.b16 %v439, %v438
    %v523 = vpack.c.b16 %v441, %v440
    %v524 = vpack.c.b16 %v443, %v442
    %v525 = vpack.c.b16 %v445, %v444
    %v526 = vpack.c.b16 %v447, %v446
    %v527 = vpack.c.b16 %v449, %v448
    %v528 = vpack.c.b16 %v451, %v450
    %v529 = vpack.c.b16 %v453, %v452
    %v530 = vpack.c.b16 %v455, %v454
    %v531 = vpack.c.b16 %v457, %v456
    %v532 = vpack.c.b16 %v459, %v458
    %v533 = vpack.c.b16 %v461, %v460
    %v534 = vpack.c.b16 %v463, %v462
    %v535 = vpack.c.b16 %v465, %v464
    %v536 = vpack.c.b16 %v467, %v466
    %v537 = vpack.c.b16 %v469, %v468
    %v538 = vpack.c.b16 %v471, %v470
    %v539 = vpack.c.b16 %v473, %v472
    %v540 = vpack.c.b16 %v475, %v474
    %v541 = vpack.c.b16 %v477, %v476
    %v542 = vpack.c.b16 %v479, %v478
    %v543 = vpack.c.b16 %v481, %v480
    %v544 = vpack.c.b16 %v483, %v482
    %v545 = vpack.c.b16 %v485, %v484
    %v546 = vpack.c.b16 %v487, %v486
    %v547 = vpack.c.b16 %v489, %v488
    %v548 = vpack.c.b16 %v491, %v490
    %v549 = vpack.c.b16 %v493, %v492
    %606 = vmatprep.subr.bf16.mxu0 0
    %607 = vmatpush1.bf16.msra.mxu0 %v501
    %608 = vmatprep.subr.bf16.mxu0 0
    %609 = vmatpush1.bf16.msra.mxu0 %v500
    %610 = vmatprep.subr.bf16.mxu0 0
    %611 = vmatpush1.bf16.msra.mxu0 %v499
    %612 = vmatprep.subr.bf16.mxu0 0
    %613 = vmatpush1.bf16.msra.mxu0 %v498
    %614 = vmatprep.subr.bf16.mxu0 0
    %615 = vmatpush1.bf16.msra.mxu0 %v497
    %616 = vmatprep.subr.bf16.mxu0 0
    %617 = vmatpush1.bf16.msra.mxu0 %v496
    %618 = vmatprep.subr.bf16.mxu0 0
    %619 = vmatpush1.bf16.msra.mxu0 %v495
    %620 = vmatprep.subr.bf16.mxu0 0
    %621 = vmatpush1.bf16.msra.mxu0 %v494
    %622 = vmatprep.subr.bf16.mxu0 0
    %623 = vmatpush2.bf16.msra.mxu0 %v509
    %624 = vmatprep.subr.bf16.mxu0 0
    %625 = vmatpush2.bf16.msra.mxu0 %v508
    %626 = vmatprep.subr.bf16.mxu0 0
    %627 = vmatpush2.bf16.msra.mxu0 %v507
    %628 = vmatprep.subr.bf16.mxu0 0
    %629 = vmatpush2.bf16.msra.mxu0 %v506
    %630 = vmatprep.subr.bf16.mxu0 0
    %631 = vmatpush2.bf16.msra.mxu0 %v505
    %632 = vmatprep.subr.bf16.mxu0 0
    %633 = vmatpush2.bf16.msra.mxu0 %v504
    %634 = vmatprep.subr.bf16.mxu0 0
    %635 = vmatpush2.bf16.msra.mxu0 %v503
    %636 = vmatprep.subr.bf16.mxu0 0
    %637 = vmatpush2.bf16.msra.mxu0 %v502
    %638 = vmatprep.mubr.bf16.mxu0 %v257
    %639 = vmatmul.mubr.bf16.gmra.mxu0 %v256
    %v640 = vpop.f32.mrf.mxu0
    %v641 = vadd.f32 0.0, %v640
    %v642 = vpop.f32.mrf.mxu0
    %v643 = vpop.f32.mrf.mxu0
    %v644 = vadd.f32 0.0, %v643
    %v645 = vpop.f32.mrf.mxu0
    %646 = vdwg.mxu0
    %647 = vmatprep.subr.bf16.mxu0 0
    %648 = vmatpush1.bf16.msra.mxu0 %v517
    %649 = vmatprep.subr.bf16.mxu0 0
    %650 = vmatpush1.bf16.msra.mxu0 %v516
    %651 = vmatprep.subr.bf16.mxu0 0
    %652 = vmatpush1.bf16.msra.mxu0 %v515
    %653 = vmatprep.subr.bf16.mxu0 0
    %654 = vmatpush1.bf16.msra.mxu0 %v514
    %655 = vmatprep.subr.bf16.mxu0 0
    %656 = vmatpush1.bf16.msra.mxu0 %v513
    %657 = vmatprep.subr.bf16.mxu0 0
    %658 = vmatpush1.bf16.msra.mxu0 %v512
    %659 = vmatprep.subr.bf16.mxu0 0
    %660 = vmatpush1.bf16.msra.mxu0 %v511
    %661 = vmatprep.subr.bf16.mxu0 0
    %662 = vmatpush1.bf16.msra.mxu0 %v510
    %663 = vmatprep.subr.bf16.mxu0 0
    %664 = vmatpush2.bf16.msra.mxu0 %v525
    %665 = vmatprep.subr.bf16.mxu0 0
    %666 = vmatpush2.bf16.msra.mxu0 %v524
    %667 = vmatprep.subr.bf16.mxu0 0
    %668 = vmatpush2.bf16.msra.mxu0 %v523
    %669 = vmatprep.subr.bf16.mxu0 0
    %670 = vmatpush2.bf16.msra.mxu0 %v522
    %671 = vmatprep.subr.bf16.mxu0 0
    %672 = vmatpush2.bf16.msra.mxu0 %v521
    %673 = vmatprep.subr.bf16.mxu0 0
    %674 = vmatpush2.bf16.msra.mxu0 %v520
    %675 = vmatprep.subr.bf16.mxu0 0
    %676 = vmatpush2.bf16.msra.mxu0 %v519
    %677 = vmatprep.subr.bf16.mxu0 0
    %678 = vmatpush2.bf16.msra.mxu0 %v518
    %679 = vmatprep.mubr.bf16.mxu0 %v259
    %680 = vmatmul.mubr.bf16.gmra.mxu0 %v258
    %v681 = vpop.f32.mrf.mxu0
    %v682 = vadd.f32 %v641, %v681
    %v683 = vpop.f32.mrf.mxu0
    %v684 = vpop.f32.mrf.mxu0
    %v685 = vadd.f32 %v644, %v684
    %v686 = vpop.f32.mrf.mxu0
    %687 = vdwg.mxu0
    %688 = vmatprep.subr.bf16.mxu0 0
    %689 = vmatpush1.bf16.msra.mxu0 %v533
    %690 = vmatprep.subr.bf16.mxu0 0
    %691 = vmatpush1.bf16.msra.mxu0 %v532
    %692 = vmatprep.subr.bf16.mxu0 0
    %693 = vmatpush1.bf16.msra.mxu0 %v531
    %694 = vmatprep.subr.bf16.mxu0 0
    %695 = vmatpush1.bf16.msra.mxu0 %v530
    %696 = vmatprep.subr.bf16.mxu0 0
    %697 = vmatpush1.bf16.msra.mxu0 %v529
    %698 = vmatprep.subr.bf16.mxu0 0
    %699 = vmatpush1.bf16.msra.mxu0 %v528
    %700 = vmatprep.subr.bf16.mxu0 0
    %701 = vmatpush1.bf16.msra.mxu0 %v527
    %702 = vmatprep.subr.bf16.mxu0 0
    %703 = vmatpush1.bf16.msra.mxu0 %v526
    %704 = vmatprep.subr.bf16.mxu0 0
    %705 = vmatpush2.bf16.msra.mxu0 %v541
    %706 = vmatprep.subr.bf16.mxu0 0
    %707 = vmatpush2.bf16.msra.mxu0 %v540
    %708 = vmatprep.subr.bf16.mxu0 0
    %709 = vmatpush2.bf16.msra.mxu0 %v539
    %710 = vmatprep.subr.bf16.mxu0 0
    %711 = vmatpush2.bf16.msra.mxu0 %v538
    %712 = vmatprep.subr.bf16.mxu0 0
    %713 = vmatpush2.bf16.msra.mxu0 %v537
    %714 = vmatprep.subr.bf16.mxu0 0
    %715 = vmatpush2.bf16.msra.mxu0 %v536
    %716 = vmatprep.subr.bf16.mxu0 0
    %717 = vmatpush2.bf16.msra.mxu0 %v535
    %718 = vmatprep.subr.bf16.mxu0 0
    %719 = vmatpush2.bf16.msra.mxu0 %v534
    %720 = vmatprep.mubr.bf16.mxu0 %v261
    %721 = vmatmul.mubr.bf16.gmra.mxu0 %v260
    %v722 = vpop.f32.mrf.mxu0
    %v723 = vadd.f32 %v682, %v722
    %v724 = vpop.f32.mrf.mxu0
    %v725 = vpop.f32.mrf.mxu0
    %v726 = vadd.f32 %v685, %v725
    %v727 = vpop.f32.mrf.mxu0
    %728 = vdwg.mxu0
    %729 = vmatprep.subr.bf16.mxu0 0
    %730 = vmatpush1.bf16.msra.mxu0 %v549
    %731 = vmatprep.subr.bf16.mxu0 0
    %732 = vmatpush1.bf16.msra.mxu0 %v548
    %733 = vmatprep.subr.bf16.mxu0 0
    %734 = vmatpush1.bf16.msra.mxu0 %v547
    %735 = vmatprep.subr.bf16.mxu0 0
    %736 = vmatpush1.bf16.msra.mxu0 %v546
    %737 = vmatprep.subr.bf16.mxu0 0
    %738 = vmatpush1.bf16.msra.mxu0 %v545
    %739 = vmatprep.subr.bf16.mxu0 0
    %740 = vmatpush1.bf16.msra.mxu0 %v544
    %741 = vmatprep.subr.bf16.mxu0 0
    %742 = vmatpush1.bf16.msra.mxu0 %v543
    %743 = vmatprep.subr.bf16.mxu0 0
    %744 = vmatpush1.bf16.msra.mxu0 %v542
    %745 = vmatprep.subr.bf16.mxu0 0
    %746 = vmatpush2.bf16.msra.mxu0 0
    %747 = vmatprep.subr.bf16.mxu0 0
    %748 = vmatpush2.bf16.msra.mxu0 0
    %749 = vmatprep.subr.bf16.mxu0 0
    %750 = vmatpush2.bf16.msra.mxu0 0
    %751 = vmatprep.subr.bf16.mxu0 0
    %752 = vmatpush2.bf16.msra.mxu0 0
    %753 = vmatprep.subr.bf16.mxu0 0
    %754 = vmatpush2.bf16.msra.mxu0 0
    %755 = vmatprep.subr.bf16.mxu0 0
    %756 = vmatpush2.bf16.msra.mxu0 0
    %757 = vmatprep.subr.bf16.mxu0 0
    %758 = vmatpush2.bf16.msra.mxu0 0
    %759 = vmatprep.subr.bf16.mxu0 0
    %760 = vmatpush2.bf16.msra.mxu0 0
    %761 = vmatprep.mubr.bf16.mxu0 0
    %762 = vmatmul.mubr.bf16.gmra.mxu0 %v262
    %v763 = vpop.f32.mrf.mxu0
    %v764 = vadd.f32 %v723, %v763
    %v765 = vpop.f32.mrf.mxu0
    %v766 = vpop.f32.mrf.mxu0
    %v767 = vadd.f32 %v726, %v766
    %v768 = vpop.f32.mrf.mxu0
    %769 = vdwg.mxu0
    %v770 = vmax.f32 %v764, 0.0
    %v771 = vmax.f32 %v767, 0.0
    %772 = vst [vmem:[#allocation13] sm:$0xff] %v770
    %773 = vst [vmem:[#allocation13 + $0x8] sm:$0xff] %v771
    %v774 = vpack.c.bf16 %v771, %v770
    %v775 = vld [vmem:[#allocation7] sm:$0xf]
    %v776 = vld [vmem:[#allocation7 + $0x4] sm:$0xf]
    %v777 = vld [vmem:[#allocation7 + $0x8] sm:$0xf]
    %v778 = vld [vmem:[#allocation7 + $0xc] sm:$0xf]
    %v779 = vld [vmem:[#allocation7 + $0x10] sm:$0xf]
    %v780 = vld [vmem:[#allocation7 + $0x14] sm:$0xf]
    %v781 = vld [vmem:[#allocation7 + $0x18] sm:$0xf]
    %v782 = vld [vmem:[#allocation7 + $0x1c] sm:$0xf]
    %v783 = vld [vmem:[#allocation7 + $0x20] sm:$0xf]
    %v784 = vld [vmem:[#allocation7 + $0x24] sm:$0xf]
    %v785 = vld [vmem:[#allocation7 + $0x28] sm:$0xf]
    %v786 = vld [vmem:[#allocation7 + $0x2c] sm:$0xf]
    %v787 = vld [vmem:[#allocation7 + $0x30] sm:$0xf]
    %v788 = vld [vmem:[#allocation7 + $0x34] sm:$0xf]
    %v789 = vld [vmem:[#allocation7 + $0x38] sm:$0xf]
    %v790 = vld [vmem:[#allocation7 + $0x3c] sm:$0xf]
    %v807 = vunpack.c.l.b16 %v775
    %v808 = vunpack.c.l.b16 %v776
    %v809 = vunpack.c.l.b16 %v777
    %v810 = vunpack.c.l.b16 %v778
    %v811 = vunpack.c.l.b16 %v779
    %v812 = vunpack.c.l.b16 %v780
    %v813 = vunpack.c.l.b16 %v781
    %v814 = vunpack.c.l.b16 %v782
    %v815 = vunpack.c.l.b16 %v783
    %v816 = vunpack.c.l.b16 %v784
    %v817 = vunpack.c.l.b16 %v785
    %v818 = vunpack.c.l.b16 %v786
    %v819 = vunpack.c.l.b16 %v787
    %v820 = vunpack.c.l.b16 %v788
    %v821 = vunpack.c.l.b16 %v789
    %v822 = vunpack.c.l.b16 %v790
    %v823 = vpack.c.b16 %v808, %v807
    %v824 = vpack.c.b16 %v810, %v809
    %v825 = vpack.c.b16 %v812, %v811
    %v826 = vpack.c.b16 %v814, %v813
    %v827 = vpack.c.b16 %v816, %v815
    %v828 = vpack.c.b16 %v818, %v817
    %v829 = vpack.c.b16 %v820, %v819
    %v830 = vpack.c.b16 %v822, %v821
    %839 = vmatprep.subr.bf16.mxu0 0
    %840 = vmatpush1.bf16.msra.mxu0 %v830
    %841 = vmatprep.subr.bf16.mxu0 0
    %842 = vmatpush1.bf16.msra.mxu0 %v829
    %843 = vmatprep.subr.bf16.mxu0 0
    %844 = vmatpush1.bf16.msra.mxu0 %v828
    %845 = vmatprep.subr.bf16.mxu0 0
    %846 = vmatpush1.bf16.msra.mxu0 %v827
    %847 = vmatprep.subr.bf16.mxu0 0
    %848 = vmatpush1.bf16.msra.mxu0 %v826
    %849 = vmatprep.subr.bf16.mxu0 0
    %850 = vmatpush1.bf16.msra.mxu0 %v825
    %851 = vmatprep.subr.bf16.mxu0 0
    %852 = vmatpush1.bf16.msra.mxu0 %v824
    %853 = vmatprep.subr.bf16.mxu0 0
    %854 = vmatpush1.bf16.msra.mxu0 %v823
    %855 = vmatprep.subr.bf16.mxu0 0
    %856 = vmatpush2.bf16.msra.mxu0 0
    %857 = vmatprep.subr.bf16.mxu0 0
    %858 = vmatpush2.bf16.msra.mxu0 0
    %859 = vmatprep.subr.bf16.mxu0 0
    %860 = vmatpush2.bf16.msra.mxu0 0
    %861 = vmatprep.subr.bf16.mxu0 0
    %862 = vmatpush2.bf16.msra.mxu0 0
    %863 = vmatprep.subr.bf16.mxu0 0
    %864 = vmatpush2.bf16.msra.mxu0 0
    %865 = vmatprep.subr.bf16.mxu0 0
    %866 = vmatpush2.bf16.msra.mxu0 0
    %867 = vmatprep.subr.bf16.mxu0 0
    %868 = vmatpush2.bf16.msra.mxu0 0
    %869 = vmatprep.subr.bf16.mxu0 0
    %870 = vmatpush2.bf16.msra.mxu0 0
    %871 = vmatprep.mubr.bf16.mxu0 0
    %872 = vmatmul.mubr.bf16.gmra.mxu0 %v774
    %v873 = vpop.f32.mrf.mxu0
    %v874 = vadd.f32 0.0, %v873
    %v875 = vpop.f32.mrf.mxu0
    %v876 = vpop.f32.mrf.mxu0
    %v877 = vadd.f32 0.0, %v876
    %v878 = vpop.f32.mrf.mxu0
    %879 = vdwg.mxu0
    %v880 = vmax.f32 %v874, 0.0
    %v881 = vmax.f32 %v877, 0.0
    %882 = vst [vmem:[#allocation14] sm:$0xff] %v880
    %883 = vst [vmem:[#allocation14 + $0x8] sm:$0xff] %v881
    %v884 = vpack.c.bf16 %v881, %v880
    %v885 = vld [vmem:[#allocation8] sm:$0xf]
    %v886 = vld [vmem:[#allocation8 + $0x4] sm:$0xf]
    %v887 = vld [vmem:[#allocation8 + $0x8] sm:$0xf]
    %v888 = vld [vmem:[#allocation8 + $0xc] sm:$0xf]
    %v889 = vld [vmem:[#allocation8 + $0x10] sm:$0xf]
    %v890 = vld [vmem:[#allocation8 + $0x14] sm:$0xf]
    %v891 = vld [vmem:[#allocation8 + $0x18] sm:$0xf]
    %v892 = vld [vmem:[#allocation8 + $0x1c] sm:$0xf]
    %v893 = vld [vmem:[#allocation8 + $0x20] sm:$0xf]
    %v894 = vld [vmem:[#allocation8 + $0x24] sm:$0xf]
    %v895 = vld [vmem:[#allocation8 + $0x28] sm:$0xf]
    %v896 = vld [vmem:[#allocation8 + $0x2c] sm:$0xf]
    %v897 = vld [vmem:[#allocation8 + $0x30] sm:$0xf]
    %v898 = vld [vmem:[#allocation8 + $0x34] sm:$0xf]
    %v899 = vld [vmem:[#allocation8 + $0x38] sm:$0xf]
    %v900 = vld [vmem:[#allocation8 + $0x3c] sm:$0xf]
    %v917 = vunpack.c.l.b16 %v885
    %v918 = vunpack.c.l.b16 %v886
    %v919 = vunpack.c.l.b16 %v887
    %v920 = vunpack.c.l.b16 %v888
    %v921 = vunpack.c.l.b16 %v889
    %v922 = vunpack.c.l.b16 %v890
    %v923 = vunpack.c.l.b16 %v891
    %v924 = vunpack.c.l.b16 %v892
    %v925 = vunpack.c.l.b16 %v893
    %v926 = vunpack.c.l.b16 %v894
    %v927 = vunpack.c.l.b16 %v895
    %v928 = vunpack.c.l.b16 %v896
    %v929 = vunpack.c.l.b16 %v897
    %v930 = vunpack.c.l.b16 %v898
    %v931 = vunpack.c.l.b16 %v899
    %v932 = vunpack.c.l.b16 %v900
    %v933 = vpack.c.b16 %v918, %v917
    %v934 = vpack.c.b16 %v920, %v919
    %v935 = vpack.c.b16 %v922, %v921
    %v936 = vpack.c.b16 %v924, %v923
    %v937 = vpack.c.b16 %v926, %v925
    %v938 = vpack.c.b16 %v928, %v927
    %v939 = vpack.c.b16 %v930, %v929
    %v940 = vpack.c.b16 %v932, %v931
    %949 = vmatprep.subr.bf16.mxu0 0
    %950 = vmatpush1.bf16.msra.mxu0 %v940
    %951 = vmatprep.subr.bf16.mxu0 0
    %952 = vmatpush1.bf16.msra.mxu0 %v939
    %953 = vmatprep.subr.bf16.mxu0 0
    %954 = vmatpush1.bf16.msra.mxu0 %v938
    %955 = vmatprep.subr.bf16.mxu0 0
    %956 = vmatpush1.bf16.msra.mxu0 %v937
    %957 = vmatprep.subr.bf16.mxu0 0
    %958 = vmatpush1.bf16.msra.mxu0 %v936
    %959 = vmatprep.subr.bf16.mxu0 0
    %960 = vmatpush1.bf16.msra.mxu0 %v935
    %961 = vmatprep.subr.bf16.mxu0 0
    %962 = vmatpush1.bf16.msra.mxu0 %v934
    %963 = vmatprep.subr.bf16.mxu0 0
    %964 = vmatpush1.bf16.msra.mxu0 %v933
    %965 = vmatprep.subr.bf16.mxu0 0
    %966 = vmatpush2.bf16.msra.mxu0 0
    %967 = vmatprep.subr.bf16.mxu0 0
    %968 = vmatpush2.bf16.msra.mxu0 0
    %969 = vmatprep.subr.bf16.mxu0 0
    %970 = vmatpush2.bf16.msra.mxu0 0
    %971 = vmatprep.subr.bf16.mxu0 0
    %972 = vmatpush2.bf16.msra.mxu0 0
    %973 = vmatprep.subr.bf16.mxu0 0
    %974 = vmatpush2.bf16.msra.mxu0 0
    %975 = vmatprep.subr.bf16.mxu0 0
    %976 = vmatpush2.bf16.msra.mxu0 0
    %977 = vmatprep.subr.bf16.mxu0 0
    %978 = vmatpush2.bf16.msra.mxu0 0
    %979 = vmatprep.subr.bf16.mxu0 0
    %980 = vmatpush2.bf16.msra.mxu0 0
    %981 = vmatprep.mubr.bf16.mxu0 0
    %982 = vmatmul.mubr.bf16.gmra.mxu0 %v884
    %v983 = vpop.f32.mrf.mxu0
    %v984 = vadd.f32 0.0, %v983
    %v985 = vpop.f32.mrf.mxu0
    %v986 = vpop.f32.mrf.mxu0
    %v987 = vadd.f32 0.0, %v986
    %v988 = vpop.f32.mrf.mxu0
    %989 = vdwg.mxu0
    %v990 = vmax.f32 %v984, 0.0
    %v991 = vmax.f32 %v987, 0.0
    %992 = vst [vmem:[#allocation16] sm:$0xff] %v990
    %993 = vst [vmem:[#allocation16 + $0x8] sm:$0xff] %v991
    %v994 = vpack.c.bf16 %v991, %v990
    %v995 = vld [vmem:[#allocation10] sm:$0xf]
    %v996 = vld [vmem:[#allocation10 + $0x4] sm:$0xf]
    %v997 = vld [vmem:[#allocation10 + $0x8] sm:$0xf]
    %v998 = vld [vmem:[#allocation10 + $0xc] sm:$0xf]
    %v999 = vld [vmem:[#allocation10 + $0x10] sm:$0xf]
    %v1000 = vld [vmem:[#allocation10 + $0x14] sm:$0xf]
    %v1001 = vld [vmem:[#allocation10 + $0x18] sm:$0xf]
    %v1002 = vld [vmem:[#allocation10 + $0x1c] sm:$0xf]
    %v1003 = vld [vmem:[#allocation10 + $0x20] sm:$0xf]
    %v1004 = vld [vmem:[#allocation10 + $0x24] sm:$0xf]
    %v1005 = vld [vmem:[#allocation10 + $0x28] sm:$0xf]
    %v1006 = vld [vmem:[#allocation10 + $0x2c] sm:$0xf]
    %v1007 = vld [vmem:[#allocation10 + $0x30] sm:$0xf]
    %v1008 = vld [vmem:[#allocation10 + $0x34] sm:$0xf]
    %v1009 = vld [vmem:[#allocation10 + $0x38] sm:$0xf]
    %v1010 = vld [vmem:[#allocation10 + $0x3c] sm:$0xf]
    %v1027 = vunpack.c.l.b16 %v995
    %v1028 = vunpack.c.l.b16 %v996
    %v1029 = vunpack.c.l.b16 %v997
    %v1030 = vunpack.c.l.b16 %v998
    %v1031 = vunpack.c.l.b16 %v999
    %v1032 = vunpack.c.l.b16 %v1000
    %v1033 = vunpack.c.l.b16 %v1001
    %v1034 = vunpack.c.l.b16 %v1002
    %v1035 = vunpack.c.l.b16 %v1003
    %v1036 = vunpack.c.l.b16 %v1004
    %v1037 = vunpack.c.l.b16 %v1005
    %v1038 = vunpack.c.l.b16 %v1006
    %v1039 = vunpack.c.l.b16 %v1007
    %v1040 = vunpack.c.l.b16 %v1008
    %v1041 = vunpack.c.l.b16 %v1009
    %v1042 = vunpack.c.l.b16 %v1010
    %v1043 = vpack.c.b16 %v1028, %v1027
    %v1044 = vpack.c.b16 %v1030, %v1029
    %v1045 = vpack.c.b16 %v1032, %v1031
    %v1046 = vpack.c.b16 %v1034, %v1033
    %v1047 = vpack.c.b16 %v1036, %v1035
    %v1048 = vpack.c.b16 %v1038, %v1037
    %v1049 = vpack.c.b16 %v1040, %v1039
    %v1050 = vpack.c.b16 %v1042, %v1041
    %1059 = vmatprep.subr.bf16.mxu0 0
    %1060 = vmatpush1.bf16.msra.mxu0 %v1050
    %1061 = vmatprep.subr.bf16.mxu0 0
    %1062 = vmatpush1.bf16.msra.mxu0 %v1049
    %1063 = vmatprep.subr.bf16.mxu0 0
    %1064 = vmatpush1.bf16.msra.mxu0 %v1048
    %1065 = vmatprep.subr.bf16.mxu0 0
    %1066 = vmatpush1.bf16.msra.mxu0 %v1047
    %1067 = vmatprep.subr.bf16.mxu0 0
    %1068 = vmatpush1.bf16.msra.mxu0 %v1046
    %1069 = vmatprep.subr.bf16.mxu0 0
    %1070 = vmatpush1.bf16.msra.mxu0 %v1045
    %1071 = vmatprep.subr.bf16.mxu0 0
    %1072 = vmatpush1.bf16.msra.mxu0 %v1044
    %1073 = vmatprep.subr.bf16.mxu0 0
    %1074 = vmatpush1.bf16.msra.mxu0 %v1043
    %1075 = vmatprep.subr.bf16.mxu0 0
    %1076 = vmatpush2.bf16.msra.mxu0 0
    %1077 = vmatprep.subr.bf16.mxu0 0
    %1078 = vmatpush2.bf16.msra.mxu0 0
    %1079 = vmatprep.subr.bf16.mxu0 0
    %1080 = vmatpush2.bf16.msra.mxu0 0
    %1081 = vmatprep.subr.bf16.mxu0 0
    %1082 = vmatpush2.bf16.msra.mxu0 0
    %1083 = vmatprep.subr.bf16.mxu0 0
    %1084 = vmatpush2.bf16.msra.mxu0 0
    %1085 = vmatprep.subr.bf16.mxu0 0
    %1086 = vmatpush2.bf16.msra.mxu0 0
    %1087 = vmatprep.subr.bf16.mxu0 0
    %1088 = vmatpush2.bf16.msra.mxu0 0
    %1089 = vmatprep.subr.bf16.mxu0 0
    %1090 = vmatpush2.bf16.msra.mxu0 0
    %1091 = vmatprep.mubr.bf16.mxu0 0
    %1092 = vmatmul.mubr.bf16.gmra.mxu0 %v994
    %v1093 = vpop.f32.mrf.mxu0
    %v1094 = vadd.f32 0.0, %v1093
    %v1095 = vpop.f32.mrf.mxu0
    %v1096 = vpop.f32.mrf.mxu0
    %v1097 = vadd.f32 0.0, %v1096
    %v1098 = vpop.f32.mrf.mxu0
    %1099 = vdwg.mxu0
    %v1100 = vmax.f32 %v1094, 0.0
    %v1101 = vmax.f32 %v1097, 0.0
    %1102 = vst [vmem:[#allocation17] sm:$0xff] %v1100
    %1103 = vst [vmem:[#allocation17 + $0x8] sm:$0xff] %v1101
    %v1104 = vpack.c.bf16 %v1101, %v1100
    %v1105 = vld [vmem:[#allocation11] sm:$0xf]
    %v1106 = vld [vmem:[#allocation11 + $0x4] sm:$0xf]
    %v1107 = vld [vmem:[#allocation11 + $0x8] sm:$0xf]
    %v1108 = vld [vmem:[#allocation11 + $0xc] sm:$0xf]
    %v1109 = vld [vmem:[#allocation11 + $0x10] sm:$0xf]
    %v1110 = vld [vmem:[#allocation11 + $0x14] sm:$0xf]
    %v1111 = vld [vmem:[#allocation11 + $0x18] sm:$0xf]
    %v1112 = vld [vmem:[#allocation11 + $0x1c] sm:$0xf]
    %v1113 = vld [vmem:[#allocation11 + $0x20] sm:$0xf]
    %v1114 = vld [vmem:[#allocation11 + $0x24] sm:$0xf]
    %v1115 = vld [vmem:[#allocation11 + $0x28] sm:$0xf]
    %v1116 = vld [vmem:[#allocation11 + $0x2c] sm:$0xf]
    %v1117 = vld [vmem:[#allocation11 + $0x30] sm:$0xf]
    %v1118 = vld [vmem:[#allocation11 + $0x34] sm:$0xf]
    %v1119 = vld [vmem:[#allocation11 + $0x38] sm:$0xf]
    %v1120 = vld [vmem:[#allocation11 + $0x3c] sm:$0xf]
    %v1137 = vunpack.c.l.b16 %v1105
    %v1138 = vunpack.c.l.b16 %v1106
    %v1139 = vunpack.c.l.b16 %v1107
    %v1140 = vunpack.c.l.b16 %v1108
    %v1141 = vunpack.c.l.b16 %v1109
    %v1142 = vunpack.c.l.b16 %v1110
    %v1143 = vunpack.c.l.b16 %v1111
    %v1144 = vunpack.c.l.b16 %v1112
    %v1145 = vunpack.c.l.b16 %v1113
    %v1146 = vunpack.c.l.b16 %v1114
    %v1147 = vunpack.c.l.b16 %v1115
    %v1148 = vunpack.c.l.b16 %v1116
    %v1149 = vunpack.c.l.b16 %v1117
    %v1150 = vunpack.c.l.b16 %v1118
    %v1151 = vunpack.c.l.b16 %v1119
    %v1152 = vunpack.c.l.b16 %v1120
    %v1153 = vpack.c.b16 %v1138, %v1137
    %v1154 = vpack.c.b16 %v1140, %v1139
    %v1155 = vpack.c.b16 %v1142, %v1141
    %v1156 = vpack.c.b16 %v1144, %v1143
    %v1157 = vpack.c.b16 %v1146, %v1145
    %v1158 = vpack.c.b16 %v1148, %v1147
    %v1159 = vpack.c.b16 %v1150, %v1149
    %v1160 = vpack.c.b16 %v1152, %v1151
    %1169 = vmatprep.subr.bf16.mxu0 0
    %1170 = vmatpush1.bf16.msra.mxu0 %v1160
    %1171 = vmatprep.subr.bf16.mxu0 0
    %1172 = vmatpush1.bf16.msra.mxu0 %v1159
    %1173 = vmatprep.subr.bf16.mxu0 0
    %1174 = vmatpush1.bf16.msra.mxu0 %v1158
    %1175 = vmatprep.subr.bf16.mxu0 0
    %1176 = vmatpush1.bf16.msra.mxu0 %v1157
    %1177 = vmatprep.subr.bf16.mxu0 0
    %1178 = vmatpush1.bf16.msra.mxu0 %v1156
    %1179 = vmatprep.subr.bf16.mxu0 0
    %1180 = vmatpush1.bf16.msra.mxu0 %v1155
    %1181 = vmatprep.subr.bf16.mxu0 0
    %1182 = vmatpush1.bf16.msra.mxu0 %v1154
    %1183 = vmatprep.subr.bf16.mxu0 0
    %1184 = vmatpush1.bf16.msra.mxu0 %v1153
    %1185 = vmatprep.subr.bf16.mxu0 0
    %1186 = vmatpush2.bf16.msra.mxu0 0
    %1187 = vmatprep.subr.bf16.mxu0 0
    %1188 = vmatpush2.bf16.msra.mxu0 0
    %1189 = vmatprep.subr.bf16.mxu0 0
    %1190 = vmatpush2.bf16.msra.mxu0 0
    %1191 = vmatprep.subr.bf16.mxu0 0
    %1192 = vmatpush2.bf16.msra.mxu0 0
    %1193 = vmatprep.subr.bf16.mxu0 0
    %1194 = vmatpush2.bf16.msra.mxu0 0
    %1195 = vmatprep.subr.bf16.mxu0 0
    %1196 = vmatpush2.bf16.msra.mxu0 0
    %1197 = vmatprep.subr.bf16.mxu0 0
    %1198 = vmatpush2.bf16.msra.mxu0 0
    %1199 = vmatprep.subr.bf16.mxu0 0
    %1200 = vmatpush2.bf16.msra.mxu0 0
    %1201 = vmatprep.mubr.bf16.mxu0 0
    %1202 = vmatmul.mubr.bf16.gmra.mxu0 %v1104
    %v1203 = vpop.f32.mrf.mxu0
    %v1204 = vadd.f32 0.0, %v1203
    %v1205 = vpop.f32.mrf.mxu0
    %v1206 = vpop.f32.mrf.mxu0
    %v1207 = vadd.f32 0.0, %v1206
    %v1208 = vpop.f32.mrf.mxu0
    %1209 = vdwg.mxu0
    %1210 = vst [vmem:[#allocation19] sm:$0xff] %v1204
    %1211 = vst [vmem:[#allocation19 + $0x8] sm:$0xff] %v1207
    // Predicated region
    $region50: #{tpu_custom_call.1} parent=1 // pred_check
      _
    $region51: #{tpu_custom_call.1} parent=1 // pred_check_branch
      %1213 = sbr.rel (0) target = $region53
    $region52: #{tpu_custom_call.1} parent=1 // pred_region
      %s1215 = ssub.s32 256, 256
      %1216 = vsyncadd [#allocation4], %s1215
      %s1217 = sshll.u32 [#allocation13], 4
      %s1218 = int_to_ptr.vmem [resolvable:$true] %s1217
      %1223 = dma.vmem_to_hbm [thread:$0]  %s1218, 256, %s6, [#allocation4], 128, 128, 8
    $region53: #{tpu_custom_call.1} parent=1 // pred_fallthru
      _
    // Predicated region
    $region54: #{tpu_custom_call.1} parent=1 // pred_check
      _
    $region55: #{tpu_custom_call.1} parent=1 // pred_check_branch
      %1225 = sbr.rel (0) target = $region57
    $region56: #{tpu_custom_call.1} parent=1 // pred_region
      %s1227 = ssub.s32 256, 256
      %1228 = vsyncadd [#allocation15], %s1227
      %s1229 = sshll.u32 [#allocation14], 4
      %s1230 = int_to_ptr.vmem [resolvable:$true] %s1229
      %1235 = dma.vmem_to_hbm [thread:$0]  %s1230, 256, %s7, [#allocation15], 128, 128, 8
    $region57: #{tpu_custom_call.1} parent=1 // pred_fallthru
      _
    // Predicated region
    $region58: #{tpu_custom_call.1} parent=1 // pred_check
      _
    $region59: #{tpu_custom_call.1} parent=1 // pred_check_branch
      %1237 = sbr.rel (0) target = $region61
    $region60: #{tpu_custom_call.1} parent=1 // pred_region
      %s1239 = ssub.s32 256, 256
      %1240 = vsyncadd [#allocation15], %s1239
      %s1241 = sshll.u32 [#allocation16], 4
      %s1242 = int_to_ptr.vmem [resolvable:$true] %s1241
      %1247 = dma.vmem_to_hbm [thread:$0]  %s1242, 256, %s8, [#allocation15], 128, 128, 8
    $region61: #{tpu_custom_call.1} parent=1 // pred_fallthru
      _
    // Predicated region
    $region62: #{tpu_custom_call.1} parent=1 // pred_check
      _
    $region63: #{tpu_custom_call.1} parent=1 // pred_check_branch
      %1249 = sbr.rel (0) target = $region65
    $region64: #{tpu_custom_call.1} parent=1 // pred_region
      %s1251 = ssub.s32 256, 256
      %1252 = vsyncadd [#allocation18], %s1251
      %s1253 = sshll.u32 [#allocation17], 4
      %s1254 = int_to_ptr.vmem [resolvable:$true] %s1253
      %1259 = dma.vmem_to_hbm [thread:$0]  %s1254, 256, %s9, [#allocation18], 128, 128, 8
    $region65: #{tpu_custom_call.1} parent=1 // pred_fallthru
      _
    // Predicated region
    $region66: #{tpu_custom_call.1} parent=1 // pred_check
      _
    $region67: #{tpu_custom_call.1} parent=1 // pred_check_branch
      %1261 = sbr.rel (0) target = $region69
    $region68: #{tpu_custom_call.1} parent=1 // pred_region
      %s1263 = ssub.s32 256, 256
      %1264 = vsyncadd [#allocation18], %s1263
      %s1265 = sshll.u32 [#allocation19], 4
      %s1266 = int_to_ptr.vmem [resolvable:$true] %s1265
      %1271 = dma.vmem_to_hbm [thread:$0]  %s1266, 256, %s10, [#allocation18], 128, 128, 8
    $region69: #{tpu_custom_call.1} parent=1 // pred_fallthru
      _
    // Predicated region
    $region70: #{tpu_custom_call.1} parent=1 // pred_check
      _
    $region71: #{tpu_custom_call.1} parent=1 // pred_check_branch
      %1273 = sbr.rel (0) target = $region73
    $region72: #{tpu_custom_call.1} parent=1 // pred_region
      %1274 = dma.done [#allocation4], 256
    $region73: #{tpu_custom_call.1} parent=1 // pred_fallthru
      _
    // Predicated region
    $region74: #{tpu_custom_call.1} parent=1 // pred_check
      _
    $region75: #{tpu_custom_call.1} parent=1 // pred_check_branch
      %1276 = sbr.rel (0) target = $region77
    $region76: #{tpu_custom_call.1} parent=1 // pred_region
      %1277 = dma.done [#allocation15], 256
    $region77: #{tpu_custom_call.1} parent=1 // pred_fallthru
      _
    // Predicated region
    $region78: #{tpu_custom_call.1} parent=1 // pred_check
      _
    $region79: #{tpu_custom_call.1} parent=1 // pred_check_branch
      %1279 = sbr.rel (0) target = $region81
    $region80: #{tpu_custom_call.1} parent=1 // pred_region
      %1280 = dma.done [#allocation15], 256
    $region81: #{tpu_custom_call.1} parent=1 // pred_fallthru
      _
    // Predicated region
    $region82: #{tpu_custom_call.1} parent=1 // pred_check
      _
    $region83: #{tpu_custom_call.1} parent=1 // pred_check_branch
      %1282 = sbr.rel (0) target = $region85
    $region84: #{tpu_custom_call.1} parent=1 // pred_region
      %1283 = dma.done [#allocation18], 256
    $region85: #{tpu_custom_call.1} parent=1 // pred_fallthru
      _
    // Predicated region
    $region86: #{tpu_custom_call.1} parent=1 // pred_check
      _
    $region87: #{tpu_custom_call.1} parent=1 // pred_check_branch
      %1285 = sbr.rel (0) target = $region89
    $region88: #{tpu_custom_call.1} parent=1 // pred_region
      %1286 = dma.done [#allocation18], 256
    $region89: #{tpu_custom_call.1} parent=1 // pred_fallthru
      _
    %1287 = vsyncpa [#allocation3], 1
    %1288 = vsyncpa [#allocation6], 1
    %1289 = vsyncpa [#allocation9], 1
    %1290 = vsyncpa [#allocation12], 1
    %1291 = vsyncpa [#allocation4], 1
    %1292 = vsyncpa [#allocation15], 1
    %1293 = vsyncpa [#allocation18], 1

</llo_original>
